<compile_context>
chip_gen: v7x
topology: tpu7x:2x2x1
jax: 0.10.0
libtpu: 0.0.40
codegen_flags: <defaults>
</compile_context>

<pallas_src>
import jax
import jax.numpy as jnp
from jax.experimental import pallas as pl
from jax.experimental.pallas import tpu as pltpu


def _round_up(v, m):
    return (v + m - 1) // m * m


def _vmem_bytes():
    """Physical VMEM of the attached TPU (generation-aware); safe fallback."""
    try:
        return int(pltpu.get_tpu_info().vmem_capacity_bytes)
    except Exception:
        return 64 << 20  # v7x-sized fallback: safe on every generation


def _plan(b, c, oc, oh, ow, k):
    """Static tiling plan: padded F / P sizes, lane tile width, VMEM limit."""
    f = c * k * k
    f_pad = _round_up(f, 8)            # clean sublane tiling (e.g. 36 -> 40)
    n_pos = oh * ow
    n_pos128 = _round_up(n_pos, 128)   # lane-dense, unmasked stores

    vmem = _vmem_bytes()
    budget = int(vmem * 0.7)           # tiles (double-buffered) get ~70% of VMEM
    # f32 bytes per position column, double-buffered, for x + w + out blocks.
    per_col = 2 * (b * f_pad + oc * f_pad + b * oc) * 4
    tp_max = max(128, (budget // per_col) // 128 * 128)

    # Keep several grid steps so DMA/compute overlap and both v7x TensorCores
    # get tiles; don't let a huge tile collapse the grid to a single step.
    min_tiles = 4
    while min_tiles > 1 and n_pos128 < 128 * min_tiles:
        min_tiles //= 2
    n_tiles = max(-(-n_pos128 // tp_max), min_tiles)
    tp = _round_up(-(-n_pos128 // n_tiles), 128)
    n_pos_pad = tp * n_tiles

    return dict(f=f, f_pad=f_pad, n_pos=n_pos, n_pos_pad=n_pos_pad, tp=tp,
                n_tiles=n_tiles, vmem_limit=int(vmem * 0.9))


def prepare_weight(weight, plan):
    """(1, OC, C, oh, ow, K*K) -> lane-major (OC, F_pad, P_pad).

    Done ONCE at parameter-init time so the per-forward path never re-reads or
    re-transposes the dominant unshared-weight tensor."""
    _, oc, c, oh, ow, kk = weight.shape
    f, f_pad = plan["f"], plan["f_pad"]
    n_pos, n_pos_pad = plan["n_pos"], plan["n_pos_pad"]
    w = weight[0].transpose(0, 1, 4, 2, 3).reshape(oc, f, n_pos)   # (OC, F, P)
    w = jnp.pad(w, ((0, 0), (0, f_pad - f), (0, n_pos_pad - n_pos)))
    return w.astype(jnp.float32)


def _local_connect_kernel(x_ref, w_ref, o_ref):
    # x_ref: (B, F_pad, TP)  im2col patches, positions on the lane axis
    # w_ref: (OC, F_pad, TP) per-position (unshared) weights
    # o_ref: (B, OC, TP)
    x = x_ref[...]
    n_oc = w_ref.shape[0]
    # Process OC in sublane groups of 8 and emit one dense (B, 8, TP) store per
    # group: full unmasked vst instead of per-OC single-sublane masked stores.
    for oc0 in range(0, n_oc, 8):
        oc1 = min(oc0 + 8, n_oc)
        rows = [jnp.sum(x * w_ref[oc], axis=1, keepdims=True)      # (B, 1, TP)
                for oc in range(oc0, oc1)]
        o_ref[:, oc0:oc1, :] = jnp.concatenate(rows, axis=1)


def local_connect(x, w_prepped, plan, kernel_size, stride, padding):
    """x: (B, C, H, W) f32. w_prepped: output of prepare_weight().
    Returns (B, OC, oh, ow), matching LocalConnect.forward."""
    b, c, h, w = x.shape
    k, s, p = kernel_size, stride, padding
    oh = (h + 2 * p - k) // s + 1
    ow = (w + 2 * p - k) // s + 1
    oc = w_prepped.shape[0]
    f, f_pad = plan["f"], plan["f_pad"]
    n_pos, n_pos_pad, tp = plan["n_pos"], plan["n_pos_pad"], plan["tp"]

    # pad + unfold (im2col); window dim stacked BEFORE spatial dims so the
    # lane-major (B, F, P) layout is a pure reshape (no transpose pass).
    xpad = jnp.pad(x, ((0, 0), (0, 0), (p, p), (p, p)))
    slabs = []
    for ki in range(k):
        for kj in range(k):
            slabs.append(xpad[:, :, ki:ki + s * (oh - 1) + 1:s,
                               kj:kj + s * (ow - 1) + 1:s])
    patches = jnp.stack(slabs, axis=2)                  # (B, C, K*K, oh, ow)
    x_bfp = patches.reshape(b, f, n_pos)                # F index = c*K*K + kk
    x_bfp = jnp.pad(x_bfp, ((0, 0), (0, f_pad - f), (0, n_pos_pad - n_pos)))

    grid = (n_pos_pad // tp,)
    out = pl.pallas_call(
        _local_connect_kernel,
        out_shape=jax.ShapeDtypeStruct((b, oc, n_pos_pad), jnp.float32),
        grid_spec=pltpu.PrefetchScalarGridSpec(
            num_scalar_prefetch=0,
            grid=grid,
            in_specs=[
                pl.BlockSpec((b, f_pad, tp), lambda i: (0, 0, i)),
                pl.BlockSpec((oc, f_pad, tp), lambda i: (0, 0, i)),
            ],
            out_specs=pl.BlockSpec((b, oc, tp), lambda i: (0, 0, i)),
        ),
        compiler_params=pltpu.CompilerParams(
            dimension_semantics=("parallel",),
            vmem_limit_bytes=plan["vmem_limit"],
        ),
    )(x_bfp, w_prepped)

    return out[:, :, :n_pos].reshape(b, oc, oh, ow)


if __name__ == "__main__":
    # Small shapes consistent with the module.
    B, C = 2, 4
    IMG = 16
    K, S, P = 3, 1, 1
    OC = 8

    OH = (IMG + 2 * P - K) // S + 1
    OW = OH

    key = jax.random.PRNGKey(0)
    kx, kw = jax.random.split(key)
    x = jax.random.normal(kx, (B, C, IMG, IMG), dtype=jnp.float32)
    weight = jax.random.normal(kw, (1, OC, C, OH, OW, K * K), dtype=jnp.float32)

    plan = _plan(B, C, OC, OH, OW, K)
    w_prepped = prepare_weight(weight, plan)      # hoisted: once per parameter

    out = local_connect(x, w_prepped, plan, K, S, P)
    out = jax.block_until_ready(out)
    assert out.shape == (B, OC, OH, OW)

    # Pure-JAX reference replicating the PyTorch forward exactly.
    xpad = jnp.pad(x, ((0, 0), (0, 0), (P, P), (P, P)))
    slabs = []
    for ki in range(K):
        for kj in range(K):
            slabs.append(xpad[:, :, ki:ki + S * (OH - 1) + 1:S,
                               kj:kj + S * (OW - 1) + 1:S])
    patches = jnp.stack(slabs, axis=-1)                  # (B, C, OH, OW, K*K)
    ref = jnp.sum(patches[:, None] * weight, axis=(2, 5))  # (B, OC, OH, OW)

    assert jnp.allclose(out, ref, rtol=1e-5, atol=1e-4), \
        float(jnp.max(jnp.abs(out - ref)))

    print("KERNEL_OK")
</pallas_src>

<mosaic_0001>
module attributes {stable_mosaic.version = 11 : i64} {
  func.func @_local_connect_kernel(%arg0: i32, %arg1: memref<2x40x128xf32, #tpu.memory_space<vmem>>, %arg2: memref<8x40x128xf32, #tpu.memory_space<vmem>>, %arg3: memref<2x8x128xf32, #tpu.memory_space<vmem>>) attributes {dimension_semantics = [#tpu.dimension_semantics<parallel>], iteration_bounds = array<i64: 2>, scalar_prefetch = 0 : i64, scratch_operands = 0 : i64, tpu.core_type = #tpu.core_type<tc>, window_params = [{transform_indices = @transform_0, window_bounds = array<i64: 2, 40, 128>}, {transform_indices = @transform_1, window_bounds = array<i64: 8, 40, 128>}, {transform_indices = @transform_2, window_bounds = array<i64: 2, 8, 128>}]} {
    %c0 = arith.constant 0 : index
    %c0_0 = arith.constant 0 : index
    %c0_1 = arith.constant 0 : index
    %0 = vector.load %arg1[%c0, %c0_0, %c0_1] : memref<2x40x128xf32, #tpu.memory_space<vmem>>, vector<2x40x128xf32>
    %c0_2 = arith.constant 0 : index
    %c0_3 = arith.constant 0 : index
    %c0_4 = arith.constant 0 : index
    %1 = vector.load %arg2[%c0_2, %c0_3, %c0_4] : memref<8x40x128xf32, #tpu.memory_space<vmem>>, vector<1x40x128xf32>
    %2 = vector.shape_cast %1 : vector<1x40x128xf32> to vector<40x128xf32>
    %3 = vector.shape_cast %2 : vector<40x128xf32> to vector<1x40x128xf32>
    %4 = vector.broadcast %3 : vector<1x40x128xf32> to vector<2x40x128xf32>
    %5 = arith.mulf %0, %4 : vector<2x40x128xf32>
    %cst = arith.constant dense<0.000000e+00> : vector<2x128xf32>
    %6 = vector.multi_reduction <add>, %5, %cst [1] : vector<2x40x128xf32> to vector<2x128xf32>
    %7 = vector.shape_cast %6 : vector<2x128xf32> to vector<2x1x128xf32>
    %c1 = arith.constant 1 : index
    %c0_5 = arith.constant 0 : index
    %c0_6 = arith.constant 0 : index
    %8 = vector.load %arg2[%c1, %c0_5, %c0_6] : memref<8x40x128xf32, #tpu.memory_space<vmem>>, vector<1x40x128xf32>
    %9 = vector.shape_cast %8 : vector<1x40x128xf32> to vector<40x128xf32>
    %10 = vector.shape_cast %9 : vector<40x128xf32> to vector<1x40x128xf32>
    %11 = vector.broadcast %10 : vector<1x40x128xf32> to vector<2x40x128xf32>
    %12 = arith.mulf %0, %11 : vector<2x40x128xf32>
    %cst_7 = arith.constant dense<0.000000e+00> : vector<2x128xf32>
    %13 = vector.multi_reduction <add>, %12, %cst_7 [1] : vector<2x40x128xf32> to vector<2x128xf32>
    %14 = vector.shape_cast %13 : vector<2x128xf32> to vector<2x1x128xf32>
    %c2 = arith.constant 2 : index
    %c0_8 = arith.constant 0 : index
    %c0_9 = arith.constant 0 : index
    %15 = vector.load %arg2[%c2, %c0_8, %c0_9] : memref<8x40x128xf32, #tpu.memory_space<vmem>>, vector<1x40x128xf32>
    %16 = vector.shape_cast %15 : vector<1x40x128xf32> to vector<40x128xf32>
    %17 = vector.shape_cast %16 : vector<40x128xf32> to vector<1x40x128xf32>
    %18 = vector.broadcast %17 : vector<1x40x128xf32> to vector<2x40x128xf32>
    %19 = arith.mulf %0, %18 : vector<2x40x128xf32>
    %cst_10 = arith.constant dense<0.000000e+00> : vector<2x128xf32>
    %20 = vector.multi_reduction <add>, %19, %cst_10 [1] : vector<2x40x128xf32> to vector<2x128xf32>
    %21 = vector.shape_cast %20 : vector<2x128xf32> to vector<2x1x128xf32>
    %c3 = arith.constant 3 : index
    %c0_11 = arith.constant 0 : index
    %c0_12 = arith.constant 0 : index
    %22 = vector.load %arg2[%c3, %c0_11, %c0_12] : memref<8x40x128xf32, #tpu.memory_space<vmem>>, vector<1x40x128xf32>
    %23 = vector.shape_cast %22 : vector<1x40x128xf32> to vector<40x128xf32>
    %24 = vector.shape_cast %23 : vector<40x128xf32> to vector<1x40x128xf32>
    %25 = vector.broadcast %24 : vector<1x40x128xf32> to vector<2x40x128xf32>
    %26 = arith.mulf %0, %25 : vector<2x40x128xf32>
    %cst_13 = arith.constant dense<0.000000e+00> : vector<2x128xf32>
    %27 = vector.multi_reduction <add>, %26, %cst_13 [1] : vector<2x40x128xf32> to vector<2x128xf32>
    %28 = vector.shape_cast %27 : vector<2x128xf32> to vector<2x1x128xf32>
    %c4 = arith.constant 4 : index
    %c0_14 = arith.constant 0 : index
    %c0_15 = arith.constant 0 : index
    %29 = vector.load %arg2[%c4, %c0_14, %c0_15] : memref<8x40x128xf32, #tpu.memory_space<vmem>>, vector<1x40x128xf32>
    %30 = vector.shape_cast %29 : vector<1x40x128xf32> to vector<40x128xf32>
    %31 = vector.shape_cast %30 : vector<40x128xf32> to vector<1x40x128xf32>
    %32 = vector.broadcast %31 : vector<1x40x128xf32> to vector<2x40x128xf32>
    %33 = arith.mulf %0, %32 : vector<2x40x128xf32>
    %cst_16 = arith.constant dense<0.000000e+00> : vector<2x128xf32>
    %34 = vector.multi_reduction <add>, %33, %cst_16 [1] : vector<2x40x128xf32> to vector<2x128xf32>
    %35 = vector.shape_cast %34 : vector<2x128xf32> to vector<2x1x128xf32>
    %c5 = arith.constant 5 : index
    %c0_17 = arith.constant 0 : index
    %c0_18 = arith.constant 0 : index
    %36 = vector.load %arg2[%c5, %c0_17, %c0_18] : memref<8x40x128xf32, #tpu.memory_space<vmem>>, vector<1x40x128xf32>
    %37 = vector.shape_cast %36 : vector<1x40x128xf32> to vector<40x128xf32>
    %38 = vector.shape_cast %37 : vector<40x128xf32> to vector<1x40x128xf32>
    %39 = vector.broadcast %38 : vector<1x40x128xf32> to vector<2x40x128xf32>
    %40 = arith.mulf %0, %39 : vector<2x40x128xf32>
    %cst_19 = arith.constant dense<0.000000e+00> : vector<2x128xf32>
    %41 = vector.multi_reduction <add>, %40, %cst_19 [1] : vector<2x40x128xf32> to vector<2x128xf32>
    %42 = vector.shape_cast %41 : vector<2x128xf32> to vector<2x1x128xf32>
    %c6 = arith.constant 6 : index
    %c0_20 = arith.constant 0 : index
    %c0_21 = arith.constant 0 : index
    %43 = vector.load %arg2[%c6, %c0_20, %c0_21] : memref<8x40x128xf32, #tpu.memory_space<vmem>>, vector<1x40x128xf32>
    %44 = vector.shape_cast %43 : vector<1x40x128xf32> to vector<40x128xf32>
    %45 = vector.shape_cast %44 : vector<40x128xf32> to vector<1x40x128xf32>
    %46 = vector.broadcast %45 : vector<1x40x128xf32> to vector<2x40x128xf32>
    %47 = arith.mulf %0, %46 : vector<2x40x128xf32>
    %cst_22 = arith.constant dense<0.000000e+00> : vector<2x128xf32>
    %48 = vector.multi_reduction <add>, %47, %cst_22 [1] : vector<2x40x128xf32> to vector<2x128xf32>
    %49 = vector.shape_cast %48 : vector<2x128xf32> to vector<2x1x128xf32>
    %c7 = arith.constant 7 : index
    %c0_23 = arith.constant 0 : index
    %c0_24 = arith.constant 0 : index
    %50 = vector.load %arg2[%c7, %c0_23, %c0_24] : memref<8x40x128xf32, #tpu.memory_space<vmem>>, vector<1x40x128xf32>
    %51 = vector.shape_cast %50 : vector<1x40x128xf32> to vector<40x128xf32>
    %52 = vector.shape_cast %51 : vector<40x128xf32> to vector<1x40x128xf32>
    %53 = vector.broadcast %52 : vector<1x40x128xf32> to vector<2x40x128xf32>
    %54 = arith.mulf %0, %53 : vector<2x40x128xf32>
    %cst_25 = arith.constant dense<0.000000e+00> : vector<2x128xf32>
    %55 = vector.multi_reduction <add>, %54, %cst_25 [1] : vector<2x40x128xf32> to vector<2x128xf32>
    %56 = vector.shape_cast %55 : vector<2x128xf32> to vector<2x1x128xf32>
    %57 = tpu.concatenate %7, %14, %21, %28, %35, %42, %49, %56 in 1 : vector<2x1x128xf32>, vector<2x1x128xf32>, vector<2x1x128xf32>, vector<2x1x128xf32>, vector<2x1x128xf32>, vector<2x1x128xf32>, vector<2x1x128xf32>, vector<2x1x128xf32> -> vector<2x8x128xf32>
    %c0_26 = arith.constant 0 : index
    %c0_27 = arith.constant 0 : index
    %c0_28 = arith.constant 0 : index
    %58 = vector.load %arg3[%c0_26, %c0_27, %c0_28] : memref<2x8x128xf32, #tpu.memory_space<vmem>>, vector<2x8x128xf32>
    tpu.vector_store %arg3[%c0_26, %c0_27, %c0_28], %57 {strides = array<i32>} : memref<2x8x128xf32, #tpu.memory_space<vmem>>, vector<2x8x128xf32>,
    return
  }
  func.func @transform_0(%arg0: i32) -> (i32, i32, i32) {
    %c0_i32 = arith.constant 0 : i32
    %c0_i32_0 = arith.constant 0 : i32
    %c0_i32_1 = arith.constant 0 : i32
    return %c0_i32, %c0_i32_0, %arg0 : i32, i32, i32
  }
  func.func @transform_1(%arg0: i32) -> (i32, i32, i32) {
    %c0_i32 = arith.constant 0 : i32
    %c0_i32_0 = arith.constant 0 : i32
    %c0_i32_1 = arith.constant 0 : i32
    return %c0_i32, %c0_i32_0, %arg0 : i32, i32, i32
  }
  func.func @transform_2(%arg0: i32) -> (i32, i32, i32) {
    %c0_i32 = arith.constant 0 : i32
    %c0_i32_0 = arith.constant 0 : i32
    %c0_i32_1 = arith.constant 0 : i32
    return %c0_i32, %c0_i32_0, %arg0 : i32, i32, i32
  }
}

</mosaic_0001>

<llo_original>
// kernel: tpu_custom_call.1
$region0: #{tpu_custom_call.1}
  #allocation0 [shape = 'u32[]', space=smem, size = 0x4, offset = 0x4, fixed_abs, tag = 'smem constant byte address 0x4 - core index']
  #allocation1 [shape = 'u32[144,128]{1,0:T(1,128)}', space=vmem, size = 0x12000, scoped, tag = 'internal scratch']
  %s0 = inlined_call_operand.hbm [shape: f32[2,40,256], index: 0, kind: input, shape index: {}]
  %s1 = inlined_call_operand.hbm [shape: f32[8,40,256], index: 1, kind: input, shape index: {}]
  %s2 = inlined_call_operand.hbm [shape: f32[2,8,256], index: 2, kind: output, shape index: {}]
  %s3 = sld [smem:[#allocation0]]
  $region49: #{tpu_custom_call.1} parent=0
    _
  %s5 = ssub.s32 1, %s3
  %s6 = scalar_select 0, %s5, %s3
  $region1: #{tpu_custom_call.1} parent=0
    #allocation2 [shape = 'u8[81920]{0}', space=vmem, size = 0x14000, scoped, tag = 'input window, operand 0']
    #allocation3 [shape = 's32[2]{0}', space=sflag, size = 0x8, scoped, tag = 'scoped memory for tpu_custom_call.1']
    #allocation4 [shape = 's32[2]{0}', space=sflag, size = 0x8, scoped, tag = 'scoped memory for tpu_custom_call.1']
    #allocation5 [shape = 'u8[327680]{0}', space=vmem, size = 0x50000, scoped, tag = 'input window, operand 1']
    #allocation6 [shape = 's32[2]{0}', space=sflag, size = 0x8, scoped, tag = 'scoped memory for tpu_custom_call.1']
    #allocation7 [shape = 'u8[16384]{0}', space=vmem, size = 0x4000, scoped, tag = 'output window, operand 0']
    %7 = vsyncpa [#allocation3], 0
    %s8 = scalar_lea.sflag [#allocation3], 1
    %9 = vsyncpa %s8, 0
    %10 = vsyncpa [#allocation6], 0
    %s11 = scalar_lea.sflag [#allocation6], 1
    %12 = vsyncpa %s11, 0
    %13 = vsyncpa [#allocation4], 0
    %s14 = scalar_lea.sflag [#allocation4], 1
    %15 = vsyncpa %s14, 0
    loop: start=0, step=1, limit=4
    $region2: #{tpu_custom_call.1} parent=1 // loop_pre_header
      _
    $region3: #{tpu_custom_call.1} parent=1 // loop_header
      %s17 = sphi 0, %s21
      %p18 = scmp.ge.s32.totalorder %s17, 4
      %s27 = sphi 0, %s29
      %s30 = sphi 0, %s27
      %s31 = sphi 0, %s30
      %s47 = sphi 0, %s31
      %s53 = sphi 0, %s55
      %s56 = sphi 0, %s53
      %s57 = sphi 0, %s56
      %s73 = sphi 0, %s57
      %s79 = sphi 0, %s81
      %s82 = sphi 0, %s79
      %s83 = sphi 0, %s82
      %s99 = sphi 0, %s83
    $region4: #{tpu_custom_call.1} parent=1 // loop_header_branch
      %20 = sbr.rel (%p18) target = $region8
    $region5: #{tpu_custom_call.1} parent=1 // loop_body
      %s22 = ssub.s32 %s17, 1
      %s23 = ssub.s32 %s17, 2
      %s24 = sadd.s32 %s17, 1
      %s25 = ssub.s32 %s17, %s24
      %p26 = scmp.eq.s32.totalorder %s25, 0
      %s28 = sadd.s32 %s27, 1
      %s29 = scalar_select %p26, %s27, %s28
      %p32 = pneg %p26
      %p33 = scmp.eq.s32.totalorder %s17, 1
      %p34 = por %p32, %p33
      %p35 = scmp.ne.s32.totalorder %s27, %s30
      %p36 = scmp.eq.s32.totalorder %s17, 0
      %p37 = por %p35, %p36
      %p38 = scmp.ne.s32.totalorder %s27, %s30
      %p39 = scmp.eq.s32.totalorder %s22, 1
      %p40 = por %p38, %p39
      %p41 = scmp.ne.s32.totalorder %s30, %s31
      %p42 = scmp.eq.s32.totalorder %s22, 0
      %p43 = por %p41, %p42
      %p44 = scmp.ne.s32.totalorder %s30, %s31
      %p45 = scmp.eq.s32.totalorder %s23, 1
      %p46 = por %p44, %p45
      %p48 = scmp.ne.s32.totalorder %s31, %s47
      %p49 = scmp.eq.s32.totalorder %s23, 0
      %p50 = por %p48, %p49
      %s51 = ssub.s32 %s17, %s24
      %p52 = scmp.eq.s32.totalorder %s51, 0
      %s54 = sadd.s32 %s53, 1
      %s55 = scalar_select %p52, %s53, %s54
      %p58 = pneg %p52
      %p59 = scmp.eq.s32.totalorder %s17, 1
      %p60 = por %p58, %p59
      %p61 = scmp.ne.s32.totalorder %s53, %s56
      %p62 = scmp.eq.s32.totalorder %s17, 0
      %p63 = por %p61, %p62
      %p64 = scmp.ne.s32.totalorder %s53, %s56
      %p65 = scmp.eq.s32.totalorder %s22, 1
      %p66 = por %p64, %p65
      %p67 = scmp.ne.s32.totalorder %s56, %s57
      %p68 = scmp.eq.s32.totalorder %s22, 0
      %p69 = por %p67, %p68
      %p70 = scmp.ne.s32.totalorder %s56, %s57
      %p71 = scmp.eq.s32.totalorder %s23, 1
      %p72 = por %p70, %p71
      %p74 = scmp.ne.s32.totalorder %s57, %s73
      %p75 = scmp.eq.s32.totalorder %s23, 0
      %p76 = por %p74, %p75
      %s77 = ssub.s32 %s17, %s24
      %p78 = scmp.eq.s32.totalorder %s77, 0
      %s80 = sadd.s32 %s79, 1
      %s81 = scalar_select %p78, %s79, %s80
      %p84 = pneg %p78
      %p85 = scmp.eq.s32.totalorder %s17, 1
      %p86 = por %p84, %p85
      %p87 = scmp.ne.s32.totalorder %s79, %s82
      %p88 = scmp.eq.s32.totalorder %s17, 0
      %p89 = por %p87, %p88
      %p90 = scmp.ne.s32.totalorder %s79, %s82
      %p91 = scmp.eq.s32.totalorder %s22, 1
      %p92 = por %p90, %p91
      %p93 = scmp.ne.s32.totalorder %s82, %s83
      %p94 = scmp.eq.s32.totalorder %s22, 0
      %p95 = por %p93, %p94
      %p96 = scmp.ne.s32.totalorder %s82, %s83
      %p97 = scmp.eq.s32.totalorder %s23, 1
      %p98 = por %p96, %p97
      %p100 = scmp.ne.s32.totalorder %s83, %s99
      %p101 = scmp.eq.s32.totalorder %s23, 0
      %p102 = por %p100, %p101
      %p103 = scmp.le.s32.totalorder 1, %s17
      %p104 = scmp.lt.s32.totalorder %s17, 3
      %p105 = pnand %p103, %p104
      %p106 = pneg %p105
      // Predicated region
      $region9: #{tpu_custom_call.1} parent=5 // pred_check
        _
      $region10: #{tpu_custom_call.1} parent=5 // pred_check_branch
        %108 = sbr.rel (%p105) target = $region12
      $region11: #{tpu_custom_call.1} parent=5 // pred_region
        %s109 = ssub.s32 %s17, 1
      $region12: #{tpu_custom_call.1} parent=5 // pred_fallthru
        _
      %p110 = scmp.lt.s32.totalorder %s17, 2
      // Predicated region
      $region13: #{tpu_custom_call.1} parent=5 // pred_check
        %p111 = pneg %p110
      $region14: #{tpu_custom_call.1} parent=5 // pred_check_branch
        %113 = sbr.rel (%p111) target = $region16
      $region15: #{tpu_custom_call.1} parent=5 // pred_region
        // Predicated region
        $region17: #{tpu_custom_call.1} parent=15 // pred_check
          %p114 = pneg %p37
        $region18: #{tpu_custom_call.1} parent=15 // pred_check_branch
          %116 = sbr.rel (%p114) target = $region20
        $region19: #{tpu_custom_call.1} parent=15 // pred_region
          %s117 = sand.u32 %s27, 1
          %s118 = scalar_lea.sflag [#allocation3], %s117
          %s119 = sand.u32 %s27, 1
          %s120 = smul.addr %s119, 80
          %s121 = scalar_lea.vmem [#allocation2], %s120
          %s123 = ssub.s32 1280, 1280
          %124 = vsyncadd %s118, %s123
          %s125 = smul.addr %s17, 128
          %s126 = scalar_lea.hbm %s0, %s125
          %s127 = sshll.u32 %s121, 4
          %s128 = int_to_ptr.vmem [resolvable:$true] %s127
          %133 = dma.hbm_to_vmem [thread:$0]  %s126, 1280, %s128, %s118, 256, 128, 8
        $region20: #{tpu_custom_call.1} parent=15 // pred_fallthru
          _
        // Predicated region
        $region21: #{tpu_custom_call.1} parent=15 // pred_check
          %p134 = pneg %p63
        $region22: #{tpu_custom_call.1} parent=15 // pred_check_branch
          %136 = sbr.rel (%p134) target = $region24
        $region23: #{tpu_custom_call.1} parent=15 // pred_region
          %s137 = sand.u32 %s53, 1
          %s138 = scalar_lea.sflag [#allocation6], %s137
          %s139 = sand.u32 %s53, 1
          %s140 = smul.addr %s139, 320
          %s141 = scalar_lea.vmem [#allocation5], %s140
          %s143 = ssub.s32 5120, 5120
          %144 = vsyncadd %s138, %s143
          %s145 = smul.addr %s17, 128
          %s146 = scalar_lea.hbm %s1, %s145
          %s147 = sshll.u32 %s141, 4
          %s148 = int_to_ptr.vmem [resolvable:$true] %s147
          %153 = dma.hbm_to_vmem [thread:$0]  %s146, 5120, %s148, %s138, 256, 128, 8
        $region24: #{tpu_custom_call.1} parent=15 // pred_fallthru
          _
      $region16: #{tpu_custom_call.1} parent=5 // pred_fallthru
        _
      %p154 = scmp.le.s32.totalorder 1, %s17
      %p155 = scmp.lt.s32.totalorder %s17, 3
      %p156 = pnand %p154, %p155
      %p157 = pneg %p156
      // Predicated region
      $region25: #{tpu_custom_call.1} parent=5 // pred_check
        _
      $region26: #{tpu_custom_call.1} parent=5 // pred_check_branch
        %159 = sbr.rel (%p156) target = $region28
      $region27: #{tpu_custom_call.1} parent=5 // pred_region
        %s160 = ssub.s32 %s17, 1
        %s161 = sand.u32 %s30, 1
        %s162 = scalar_lea.sflag [#allocation3], %s161
        %s163 = sand.u32 %s30, 1
        %s164 = smul.addr %s163, 80
        %s165 = scalar_lea.vmem [#allocation2], %s164
        // Predicated region
        $region29: #{tpu_custom_call.1} parent=27 // pred_check
          %p166 = pneg %p43
        $region30: #{tpu_custom_call.1} parent=27 // pred_check_branch
          %168 = sbr.rel (%p166) target = $region32
        $region31: #{tpu_custom_call.1} parent=27 // pred_region
          %169 = dma.done %s162, 1280
        $region32: #{tpu_custom_call.1} parent=27 // pred_fallthru
          _
        %s170 = sand.u32 %s56, 1
        %s171 = scalar_lea.sflag [#allocation6], %s170
        %s172 = sand.u32 %s56, 1
        %s173 = smul.addr %s172, 320
        %s174 = scalar_lea.vmem [#allocation5], %s173
        // Predicated region
        $region33: #{tpu_custom_call.1} parent=27 // pred_check
          %p175 = pneg %p69
        $region34: #{tpu_custom_call.1} parent=27 // pred_check_branch
          %177 = sbr.rel (%p175) target = $region36
        $region35: #{tpu_custom_call.1} parent=27 // pred_region
          %178 = dma.done %s171, 5120
        $region36: #{tpu_custom_call.1} parent=27 // pred_fallthru
          _
        %s179 = sand.u32 %s30, 1
        %s180 = scalar_lea.sflag [#allocation3], %s179
        %s181 = sand.u32 %s30, 1
        %s182 = smul.addr %s181, 80
        %s183 = scalar_lea.vmem [#allocation2], %s182
        %p184 = pneg %p43
        %p185 = pneg %p40
        %s186 = sand.u32 %s56, 1
        %s187 = scalar_lea.sflag [#allocation6], %s186
        %s188 = sand.u32 %s56, 1
        %s189 = smul.addr %s188, 320
        %s190 = scalar_lea.vmem [#allocation5], %s189
        %p191 = pneg %p69
        %p192 = pneg %p66
        %p193 = pneg %p95
        %p194 = pneg %p92
        %s195 = sand.u32 %s82, 1
        %s196 = scalar_lea.sflag [#allocation4], %s195
        %s197 = sand.u32 %s82, 1
        %s198 = smul.addr %s197, 16
        %s199 = scalar_lea.vmem [#allocation7], %s198
        %v200 = vld [vmem:[%s165] sm:$0xff]
        %v201 = vld [vmem:[%s165 + $0x8] sm:$0xff]
        %v202 = vld [vmem:[%s165 + $0x10] sm:$0xff]
        %v203 = vld [vmem:[%s165 + $0x18] sm:$0xff]
        %v204 = vld [vmem:[%s165 + $0x20] sm:$0xff]
        %v205 = vld [vmem:[%s165 + $0x28] sm:$0xff]
        %v206 = vld [vmem:[%s165 + $0x30] sm:$0xff]
        %v207 = vld [vmem:[%s165 + $0x38] sm:$0xff]
        %v208 = vld [vmem:[%s165 + $0x40] sm:$0xff]
        %v209 = vld [vmem:[%s165 + $0x48] sm:$0xff]
        %v210 = vld [vmem:[%s174] sm:$0xff]
        %v211 = vld [vmem:[%s174 + $0x8] sm:$0xff]
        %v212 = vld [vmem:[%s174 + $0x10] sm:$0xff]
        %v213 = vld [vmem:[%s174 + $0x18] sm:$0xff]
        %v214 = vld [vmem:[%s174 + $0x20] sm:$0xff]
        %v215 = vmul.f32 %v200, %v210
        %v216 = vmul.f32 %v201, %v211
        %v217 = vmul.f32 %v202, %v212
        %v218 = vmul.f32 %v203, %v213
        %v219 = vmul.f32 %v204, %v214
        %v220 = vmul.f32 %v205, %v210
        %v221 = vmul.f32 %v206, %v211
        %v222 = vmul.f32 %v207, %v212
        %v223 = vmul.f32 %v208, %v213
        %v224 = vmul.f32 %v209, %v214
        %v225 = vadd.f32 %v215, %v216
        %v226 = vadd.f32 %v225, %v217
        %v227 = vadd.f32 %v226, %v218
        %v228 = vadd.f32 %v227, %v219
        %v229 = vrot.slane %v228, 4
        %v230 = vadd.f32 %v228, %v229
        %v231 = vrot.slane %v230, 2
        %v232 = vadd.f32 %v230, %v231
        %v233 = vrot.slane %v232, 1
        %v234 = vadd.f32 %v232, %v233
        %v235 = vadd.f32 %v220, %v221
        %v236 = vadd.f32 %v235, %v222
        %v237 = vadd.f32 %v236, %v223
        %v238 = vadd.f32 %v237, %v224
        %v239 = vrot.slane %v238, 4
        %v240 = vadd.f32 %v238, %v239
        %v241 = vrot.slane %v240, 2
        %v242 = vadd.f32 %v240, %v241
        %v243 = vrot.slane %v242, 1
        %v244 = vadd.f32 %v242, %v243
        %s245 = scalar_lea.vmem %s174, 40 [#allocation5]
        %v246 = vld [vmem:[%s245] sm:$0xff]
        %v247 = vld [vmem:[%s245 + $0x8] sm:$0xff]
        %v248 = vld [vmem:[%s245 + $0x10] sm:$0xff]
        %v249 = vld [vmem:[%s245 + $0x18] sm:$0xff]
        %v250 = vld [vmem:[%s245 + $0x20] sm:$0xff]
        %v251 = vmul.f32 %v200, %v246
        %v252 = vmul.f32 %v201, %v247
        %v253 = vmul.f32 %v202, %v248
        %v254 = vmul.f32 %v203, %v249
        %v255 = vmul.f32 %v204, %v250
        %v256 = vmul.f32 %v205, %v246
        %v257 = vmul.f32 %v206, %v247
        %v258 = vmul.f32 %v207, %v248
        %v259 = vmul.f32 %v208, %v249
        %v260 = vmul.f32 %v209, %v250
        %v261 = vadd.f32 %v251, %v252
        %v262 = vadd.f32 %v261, %v253
        %v263 = vadd.f32 %v262, %v254
        %v264 = vadd.f32 %v263, %v255
        %v265 = vrot.slane %v264, 4
        %v266 = vadd.f32 %v264, %v265
        %v267 = vrot.slane %v266, 2
        %v268 = vadd.f32 %v266, %v267
        %v269 = vrot.slane %v268, 1
        %v270 = vadd.f32 %v268, %v269
        %v271 = vadd.f32 %v256, %v257
        %v272 = vadd.f32 %v271, %v258
        %v273 = vadd.f32 %v272, %v259
        %v274 = vadd.f32 %v273, %v260
        %v275 = vrot.slane %v274, 4
        %v276 = vadd.f32 %v274, %v275
        %v277 = vrot.slane %v276, 2
        %v278 = vadd.f32 %v276, %v277
        %v279 = vrot.slane %v278, 1
        %v280 = vadd.f32 %v278, %v279
        %s281 = scalar_lea.vmem %s174, 80 [#allocation5]
        %v282 = vld [vmem:[%s281] sm:$0xff]
        %v283 = vld [vmem:[%s281 + $0x8] sm:$0xff]
        %v284 = vld [vmem:[%s281 + $0x10] sm:$0xff]
        %v285 = vld [vmem:[%s281 + $0x18] sm:$0xff]
        %v286 = vld [vmem:[%s281 + $0x20] sm:$0xff]
        %v287 = vmul.f32 %v200, %v282
        %v288 = vmul.f32 %v201, %v283
        %v289 = vmul.f32 %v202, %v284
        %v290 = vmul.f32 %v203, %v285
        %v291 = vmul.f32 %v204, %v286
        %v292 = vmul.f32 %v205, %v282
        %v293 = vmul.f32 %v206, %v283
        %v294 = vmul.f32 %v207, %v284
        %v295 = vmul.f32 %v208, %v285
        %v296 = vmul.f32 %v209, %v286
        %v297 = vadd.f32 %v287, %v288
        %v298 = vadd.f32 %v297, %v289
        %v299 = vadd.f32 %v298, %v290
        %v300 = vadd.f32 %v299, %v291
        %v301 = vrot.slane %v300, 4
        %v302 = vadd.f32 %v300, %v301
        %v303 = vrot.slane %v302, 2
        %v304 = vadd.f32 %v302, %v303
        %v305 = vrot.slane %v304, 1
        %v306 = vadd.f32 %v304, %v305
        %v307 = vadd.f32 %v292, %v293
        %v308 = vadd.f32 %v307, %v294
        %v309 = vadd.f32 %v308, %v295
        %v310 = vadd.f32 %v309, %v296
        %v311 = vrot.slane %v310, 4
        %v312 = vadd.f32 %v310, %v311
        %v313 = vrot.slane %v312, 2
        %v314 = vadd.f32 %v312, %v313
        %v315 = vrot.slane %v314, 1
        %v316 = vadd.f32 %v314, %v315
        %s317 = scalar_lea.vmem %s174, 120 [#allocation5]
        %v318 = vld [vmem:[%s317] sm:$0xff]
        %v319 = vld [vmem:[%s317 + $0x8] sm:$0xff]
        %v320 = vld [vmem:[%s317 + $0x10] sm:$0xff]
        %v321 = vld [vmem:[%s317 + $0x18] sm:$0xff]
        %v322 = vld [vmem:[%s317 + $0x20] sm:$0xff]
        %v323 = vmul.f32 %v200, %v318
        %v324 = vmul.f32 %v201, %v319
        %v325 = vmul.f32 %v202, %v320
        %v326 = vmul.f32 %v203, %v321
        %v327 = vmul.f32 %v204, %v322
        %v328 = vmul.f32 %v205, %v318
        %v329 = vmul.f32 %v206, %v319
        %v330 = vmul.f32 %v207, %v320
        %v331 = vmul.f32 %v208, %v321
        %v332 = vmul.f32 %v209, %v322
        %v333 = vadd.f32 %v323, %v324
        %v334 = vadd.f32 %v333, %v325
        %v335 = vadd.f32 %v334, %v326
        %v336 = vadd.f32 %v335, %v327
        %v337 = vrot.slane %v336, 4
        %v338 = vadd.f32 %v336, %v337
        %v339 = vrot.slane %v338, 2
        %v340 = vadd.f32 %v338, %v339
        %v341 = vrot.slane %v340, 1
        %v342 = vadd.f32 %v340, %v341
        %v343 = vadd.f32 %v328, %v329
        %v344 = vadd.f32 %v343, %v330
        %v345 = vadd.f32 %v344, %v331
        %v346 = vadd.f32 %v345, %v332
        %v347 = vrot.slane %v346, 4
        %v348 = vadd.f32 %v346, %v347
        %v349 = vrot.slane %v348, 2
        %v350 = vadd.f32 %v348, %v349
        %v351 = vrot.slane %v350, 1
        %v352 = vadd.f32 %v350, %v351
        %s353 = scalar_lea.vmem %s174, 160 [#allocation5]
        %v354 = vld [vmem:[%s353] sm:$0xff]
        %v355 = vld [vmem:[%s353 + $0x8] sm:$0xff]
        %v356 = vld [vmem:[%s353 + $0x10] sm:$0xff]
        %v357 = vld [vmem:[%s353 + $0x18] sm:$0xff]
        %v358 = vld [vmem:[%s353 + $0x20] sm:$0xff]
        %v359 = vmul.f32 %v200, %v354
        %v360 = vmul.f32 %v201, %v355
        %v361 = vmul.f32 %v202, %v356
        %v362 = vmul.f32 %v203, %v357
        %v363 = vmul.f32 %v204, %v358
        %v364 = vmul.f32 %v205, %v354
        %v365 = vmul.f32 %v206, %v355
        %v366 = vmul.f32 %v207, %v356
        %v367 = vmul.f32 %v208, %v357
        %v368 = vmul.f32 %v209, %v358
        %v369 = vadd.f32 %v359, %v360
        %v370 = vadd.f32 %v369, %v361
        %v371 = vadd.f32 %v370, %v362
        %v372 = vadd.f32 %v371, %v363
        %v373 = vrot.slane %v372, 4
        %v374 = vadd.f32 %v372, %v373
        %v375 = vrot.slane %v374, 2
        %v376 = vadd.f32 %v374, %v375
        %v377 = vrot.slane %v376, 1
        %v378 = vadd.f32 %v376, %v377
        %v379 = vadd.f32 %v364, %v365
        %v380 = vadd.f32 %v379, %v366
        %v381 = vadd.f32 %v380, %v367
        %v382 = vadd.f32 %v381, %v368
        %v383 = vrot.slane %v382, 4
        %v384 = vadd.f32 %v382, %v383
        %v385 = vrot.slane %v384, 2
        %v386 = vadd.f32 %v384, %v385
        %v387 = vrot.slane %v386, 1
        %v388 = vadd.f32 %v386, %v387
        %s389 = scalar_lea.vmem %s174, 200 [#allocation5]
        %v390 = vld [vmem:[%s389] sm:$0xff]
        %v391 = vld [vmem:[%s389 + $0x8] sm:$0xff]
        %v392 = vld [vmem:[%s389 + $0x10] sm:$0xff]
        %v393 = vld [vmem:[%s389 + $0x18] sm:$0xff]
        %v394 = vld [vmem:[%s389 + $0x20] sm:$0xff]
        %v395 = vmul.f32 %v200, %v390
        %v396 = vmul.f32 %v201, %v391
        %v397 = vmul.f32 %v202, %v392
        %v398 = vmul.f32 %v203, %v393
        %v399 = vmul.f32 %v204, %v394
        %v400 = vmul.f32 %v205, %v390
        %v401 = vmul.f32 %v206, %v391
        %v402 = vmul.f32 %v207, %v392
        %v403 = vmul.f32 %v208, %v393
        %v404 = vmul.f32 %v209, %v394
        %v405 = vadd.f32 %v395, %v396
        %v406 = vadd.f32 %v405, %v397
        %v407 = vadd.f32 %v406, %v398
        %v408 = vadd.f32 %v407, %v399
        %v409 = vrot.slane %v408, 4
        %v410 = vadd.f32 %v408, %v409
        %v411 = vrot.slane %v410, 2
        %v412 = vadd.f32 %v410, %v411
        %v413 = vrot.slane %v412, 1
        %v414 = vadd.f32 %v412, %v413
        %v415 = vadd.f32 %v400, %v401
        %v416 = vadd.f32 %v415, %v402
        %v417 = vadd.f32 %v416, %v403
        %v418 = vadd.f32 %v417, %v404
        %v419 = vrot.slane %v418, 4
        %v420 = vadd.f32 %v418, %v419
        %v421 = vrot.slane %v420, 2
        %v422 = vadd.f32 %v420, %v421
        %v423 = vrot.slane %v422, 1
        %v424 = vadd.f32 %v422, %v423
        %s425 = scalar_lea.vmem %s174, 240 [#allocation5]
        %v426 = vld [vmem:[%s425] sm:$0xff]
        %v427 = vld [vmem:[%s425 + $0x8] sm:$0xff]
        %v428 = vld [vmem:[%s425 + $0x10] sm:$0xff]
        %v429 = vld [vmem:[%s425 + $0x18] sm:$0xff]
        %v430 = vld [vmem:[%s425 + $0x20] sm:$0xff]
        %v431 = vmul.f32 %v200, %v426
        %v432 = vmul.f32 %v201, %v427
        %v433 = vmul.f32 %v202, %v428
        %v434 = vmul.f32 %v203, %v429
        %v435 = vmul.f32 %v204, %v430
        %v436 = vmul.f32 %v205, %v426
        %v437 = vmul.f32 %v206, %v427
        %v438 = vmul.f32 %v207, %v428
        %v439 = vmul.f32 %v208, %v429
        %v440 = vmul.f32 %v209, %v430
        %v441 = vadd.f32 %v431, %v432
        %v442 = vadd.f32 %v441, %v433
        %v443 = vadd.f32 %v442, %v434
        %v444 = vadd.f32 %v443, %v435
        %v445 = vrot.slane %v444, 4
        %v446 = vadd.f32 %v444, %v445
        %v447 = vrot.slane %v446, 2
        %v448 = vadd.f32 %v446, %v447
        %v449 = vrot.slane %v448, 1
        %v450 = vadd.f32 %v448, %v449
        %v451 = vadd.f32 %v436, %v437
        %v452 = vadd.f32 %v451, %v438
        %v453 = vadd.f32 %v452, %v439
        %v454 = vadd.f32 %v453, %v440
        %v455 = vrot.slane %v454, 4
        %v456 = vadd.f32 %v454, %v455
        %v457 = vrot.slane %v456, 2
        %v458 = vadd.f32 %v456, %v457
        %v459 = vrot.slane %v458, 1
        %v460 = vadd.f32 %v458, %v459
        %s461 = scalar_lea.vmem %s174, 280 [#allocation5]
        %v462 = vld [vmem:[%s461] sm:$0xff]
        %v463 = vld [vmem:[%s461 + $0x8] sm:$0xff]
        %v464 = vld [vmem:[%s461 + $0x10] sm:$0xff]
        %v465 = vld [vmem:[%s461 + $0x18] sm:$0xff]
        %v466 = vld [vmem:[%s461 + $0x20] sm:$0xff]
        %v467 = vmul.f32 %v200, %v462
        %v468 = vmul.f32 %v201, %v463
        %v469 = vmul.f32 %v202, %v464
        %v470 = vmul.f32 %v203, %v465
        %v471 = vmul.f32 %v204, %v466
        %v472 = vmul.f32 %v205, %v462
        %v473 = vmul.f32 %v206, %v463
        %v474 = vmul.f32 %v207, %v464
        %v475 = vmul.f32 %v208, %v465
        %v476 = vmul.f32 %v209, %v466
        %v477 = vadd.f32 %v467, %v468
        %v478 = vadd.f32 %v477, %v469
        %v479 = vadd.f32 %v478, %v470
        %v480 = vadd.f32 %v479, %v471
        %v481 = vrot.slane %v480, 4
        %v482 = vadd.f32 %v480, %v481
        %v483 = vrot.slane %v482, 2
        %v484 = vadd.f32 %v482, %v483
        %v485 = vrot.slane %v484, 1
        %v486 = vadd.f32 %v484, %v485
        %v487 = vadd.f32 %v472, %v473
        %v488 = vadd.f32 %v487, %v474
        %v489 = vadd.f32 %v488, %v475
        %v490 = vadd.f32 %v489, %v476
        %v491 = vrot.slane %v490, 4
        %v492 = vadd.f32 %v490, %v491
        %v493 = vrot.slane %v492, 2
        %v494 = vadd.f32 %v492, %v493
        %v495 = vrot.slane %v494, 1
        %v496 = vadd.f32 %v494, %v495
        %vm497 = vcmask 1040384
        %v498 = vsel %vm497, %v234, %v270
        %v499 = vsel %vm497, %v244, %v280
        %vm500 = vcmask 1041408
        %v501 = vsel %vm500, %v498, %v306
        %v502 = vsel %vm500, %v499, %v316
        %vm503 = vcmask 1042432
        %v504 = vsel %vm503, %v501, %v342
        %v505 = vsel %vm503, %v502, %v352
        %vm506 = vcmask 1043456
        %v507 = vsel %vm506, %v504, %v378
        %v508 = vsel %vm506, %v505, %v388
        %vm509 = vcmask 1044480
        %v510 = vsel %vm509, %v507, %v414
        %v511 = vsel %vm509, %v508, %v424
        %vm512 = vcmask 1045504
        %v513 = vsel %vm512, %v510, %v450
        %v514 = vsel %vm512, %v511, %v460
        %vm515 = vcmask 1046528
        %v516 = vsel %vm515, %v513, %v486
        %v517 = vsel %vm515, %v514, %v496
        %518 = vst [vmem:[%s199] sm:$0xff] %v516
        %519 = vst [vmem:[%s199 + $0x8] sm:$0xff] %v517
        %s520 = sand.u32 %s82, 1
        %s521 = scalar_lea.sflag [#allocation4], %s520
        %s522 = sand.u32 %s82, 1
        %s523 = smul.addr %s522, 16
        %s524 = scalar_lea.vmem [#allocation7], %s523
        // Predicated region
        $region37: #{tpu_custom_call.1} parent=27 // pred_check
          %p525 = pneg %p92
        $region38: #{tpu_custom_call.1} parent=27 // pred_check_branch
          %527 = sbr.rel (%p525) target = $region40
        $region39: #{tpu_custom_call.1} parent=27 // pred_region
          %s529 = ssub.s32 256, 256
          %530 = vsyncadd %s521, %s529
          %s531 = smul.addr %s22, 128
          %s532 = scalar_lea.hbm %s2, %s531
          %s533 = sshll.u32 %s524, 4
          %s534 = int_to_ptr.vmem [resolvable:$true] %s533
          %539 = dma.vmem_to_hbm [thread:$0]  %s534, 256, %s532, %s521, 128, 256, 8
        $region40: #{tpu_custom_call.1} parent=27 // pred_fallthru
          _
      $region28: #{tpu_custom_call.1} parent=5 // pred_fallthru
        _
      %p540 = scmp.le.s32.totalorder 2, %s17
      // Predicated region
      $region41: #{tpu_custom_call.1} parent=5 // pred_check
        %p541 = pneg %p540
      $region42: #{tpu_custom_call.1} parent=5 // pred_check_branch
        %543 = sbr.rel (%p541) target = $region44
      $region43: #{tpu_custom_call.1} parent=5 // pred_region
        %s544 = ssub.s32 %s17, 2
        // Predicated region
        $region45: #{tpu_custom_call.1} parent=43 // pred_check
          %p545 = pneg %p98
        $region46: #{tpu_custom_call.1} parent=43 // pred_check_branch
          %547 = sbr.rel (%p545) target = $region48
        $region47: #{tpu_custom_call.1} parent=43 // pred_region
          %s548 = sand.u32 %s83, 1
          %s549 = scalar_lea.sflag [#allocation4], %s548
          %s550 = sand.u32 %s83, 1
          %s551 = smul.addr %s550, 16
          %s552 = scalar_lea.vmem [#allocation7], %s551
          %553 = dma.done %s549, 256
        $region48: #{tpu_custom_call.1} parent=43 // pred_fallthru
          _
      $region44: #{tpu_custom_call.1} parent=5 // pred_fallthru
        _
    $region6: #{tpu_custom_call.1} parent=1 // loop_footer
      %s21 = sadd.s32 1, %s17
    $region7: #{tpu_custom_call.1} parent=1 // loop_footer_branch
      %16 = sbr.rel target = $region3
    $region8: #{tpu_custom_call.1} parent=1 // loop_exit
      _
    %554 = vsyncpa [#allocation3], 1
    %s555 = scalar_lea.sflag [#allocation3], 1
    %556 = vsyncpa %s555, 1
    %557 = vsyncpa [#allocation6], 1
    %s558 = scalar_lea.sflag [#allocation6], 1
    %559 = vsyncpa %s558, 1
    %560 = vsyncpa [#allocation4], 1
    %s561 = scalar_lea.sflag [#allocation4], 1
    %562 = vsyncpa %s561, 1

</llo_original>
